<compile_context>
chip_gen: v6e
topology: v6e:2x2x1
jax: 0.10.0
libtpu: 0.0.40
codegen_flags: <defaults>
</compile_context>

<pallas_src>
import numpy as np
import jax
import jax.numpy as jnp
from jax.experimental import pallas as pl
from jax.experimental.pallas import tpu as pltpu

LOG_STD_MAX = 2.0
LOG_STD_MIN = -20.0
HIDDEN = 256        # hidden width of fc1/fc2/fc3 (fixed by the module)
HEAD_WIDTH = 256    # fused mu/log_std head; log_std columns start at lane 128
OUT_WIDTH = 128     # lane-dense output slab: actions in [0, A), logp in lane A
TILE_CAP = 1024     # max rows per grid step


def make_actor_kernel(max_action: float, action_dim: int):
    log2 = float(np.log(2.0))
    half_log_2pi = 0.5 * float(np.log(2.0 * np.pi))
    A = action_dim

    def actor_kernel(x_ref, eps_ref,
                     w1_ref, b1_ref, w2_ref, b2_ref, w3_ref, b3_ref,
                     wh_ref, bh_ref,
                     out_ref):
        x = x_ref[...]                                   # (tm, D_in) f32

        # fc1 -> relu.  Keep f32 operands (K is tiny; bf16 saves nothing here).
        h = jnp.dot(x, w1_ref[...], preferred_element_type=jnp.float32) + b1_ref[...]
        h = jnp.maximum(h, 0.0)
        # fc2 -> relu (bf16 MXU operands, f32 accumulate)
        h = jnp.dot(h.astype(jnp.bfloat16), w2_ref[...],
                    preferred_element_type=jnp.float32) + b2_ref[...]
        h = jnp.maximum(h, 0.0)
        # fc3 -> relu
        h = jnp.dot(h.astype(jnp.bfloat16), w3_ref[...],
                    preferred_element_type=jnp.float32) + b3_ref[...]
        h = jnp.maximum(h, 0.0)

        # Fused heads: one (256, 256) matmul.  mu lives in lanes [0, A),
        # log_std in lanes [128, 128+A) -> both slices are 128-lane aligned,
        # so no cross-lane shuffle is needed.
        y = jnp.dot(h.astype(jnp.bfloat16), wh_ref[...],
                    preferred_element_type=jnp.float32) + bh_ref[...]
        mu = y[:, :A]
        log_std = jnp.clip(y[:, 128:128 + A], LOG_STD_MIN, LOG_STD_MAX)
        std = jnp.exp(log_std)

        # Reparameterized sample: hidden = mu + std * eps, eps ~ N(0, 1).
        eps = eps_ref[...]                               # (tm, A)
        hidden = mu + std * eps

        # Normal(mu, std).log_prob(hidden) = -0.5*eps^2 - log_std - 0.5*log(2*pi)
        lp = -0.5 * (eps * eps) - log_std - half_log_2pi
        # tanh change-of-variables correction (matches the PyTorch reference;
        # the constant Jacobian of the max_action scaling is omitted there too).
        corr = 2.0 * (log2 - hidden - jax.nn.softplus(-2.0 * hidden))
        # single combined cross-lane reduction
        logp = jnp.sum(lp - corr, axis=-1, keepdims=True)   # (tm, 1)

        actions = max_action * jnp.tanh(hidden)             # (tm, A)

        # One lane-dense (tm, 128) output block: actions in lanes [0, A),
        # log_prob in lane A, zeros elsewhere -> single dense output DMA.
        out_ref[...] = jnp.zeros_like(out_ref)
        out_ref[:, :A] = actions
        out_ref[:, A:A + 1] = logp

    return actor_kernel


def pack_params(w1, b1, w2, b2, w3, b3, wmu, bmu, wstd, bstd):
    """Weights stored as (in, out).  mu/log_std heads fused into a 256-wide
    matrix with log_std columns starting at lane 128 (128-aligned slices)."""
    A = wmu.shape[1]
    assert A <= 127, "action_dim must fit in the 128-lane output slab"
    wh = jnp.zeros((HIDDEN, HEAD_WIDTH), jnp.float32)
    wh = wh.at[:, :A].set(wmu).at[:, 128:128 + A].set(wstd)
    bh = jnp.zeros((1, HEAD_WIDTH), jnp.float32)
    bh = bh.at[:, :A].set(bmu).at[:, 128:128 + A].set(bstd)
    return dict(
        w1=w1.astype(jnp.float32), b1=b1,                 # fc1 stays f32
        w2=w2.astype(jnp.bfloat16), b2=b2,
        w3=w3.astype(jnp.bfloat16), b3=b3,
        wh=wh.astype(jnp.bfloat16), bh=bh,
    )


def _pick_tile(B):
    if B <= 16:
        return B                       # single block (equals full batch dim)
    # >= 2 grid steps for moderate batches so the "parallel" batch axis can
    # shard across v7x's two TensorCores; cap rows per step at TILE_CAP.
    return min(TILE_CAP, -(-((B + 1) // 2) // 8) * 8)


def actor_forward(params, x, eps, max_action, action_dim):
    """params: dict w1,b1,w2,b2,w3,b3,wh,bh (weights (in,out), heads fused)."""
    B, D_in = x.shape
    A = action_dim
    assert eps.shape == (B, A)

    tm = _pick_tile(B)
    B_eff = B
    if B < 8:                          # tiny batch: pad to one 8-row tile
        x = jnp.pad(x, ((0, 8 - B), (0, 0)))
        eps = jnp.pad(eps, ((0, 8 - B), (0, 0)))
        B_eff, tm = 8, 8
    grid = (pl.cdiv(B_eff, tm),)       # ragged last tile handled by Pallas

    def row_spec(d):
        return pl.BlockSpec((tm, d), lambda i: (i, 0))

    def const_spec(arr):               # resident weights (constant index_map)
        return pl.BlockSpec(arr.shape, lambda i: (0, 0))

    weight_bytes = sum(int(np.prod(p.shape)) * p.dtype.itemsize
                       for p in params.values())
    cost = pl.CostEstimate(
        flops=2 * B_eff * (D_in * HIDDEN + 2 * HIDDEN * HIDDEN + HIDDEN * HEAD_WIDTH),
        transcendentals=4 * B_eff * A,
        bytes_accessed=weight_bytes + B_eff * (D_in + A + OUT_WIDTH) * 4,
    )

    out = pl.pallas_call(
        make_actor_kernel(float(max_action), A),
        out_shape=jax.ShapeDtypeStruct((B_eff, OUT_WIDTH), jnp.float32),
        grid_spec=pltpu.PrefetchScalarGridSpec(
            num_scalar_prefetch=0,
            grid=grid,
            in_specs=[
                row_spec(D_in),              # x
                row_spec(A),                 # eps
                const_spec(params["w1"]), const_spec(params["b1"]),
                const_spec(params["w2"]), const_spec(params["b2"]),
                const_spec(params["w3"]), const_spec(params["b3"]),
                const_spec(params["wh"]), const_spec(params["bh"]),
            ],
            out_specs=pl.BlockSpec((tm, OUT_WIDTH), lambda i: (i, 0)),
        ),
        compiler_params=pltpu.CompilerParams(
            dimension_semantics=("parallel",),
            vmem_limit_bytes=32 * 1024 * 1024),
        cost_estimate=cost,
    )(x, eps,
      params["w1"], params["b1"],
      params["w2"], params["b2"],
      params["w3"], params["b3"],
      params["wh"], params["bh"])

    actions = out[:B, :A]
    log_prob_actions = out[:B, A]
    return actions, log_prob_actions


def init_linear(key, fan_in, fan_out):
    """Deterministic init mimicking nn.Linear's uniform(-1/sqrt(fan_in), 1/sqrt(fan_in))."""
    kw, kb = jax.random.split(key)
    bound = 1.0 / np.sqrt(fan_in)
    w = jax.random.uniform(kw, (fan_in, fan_out), jnp.float32, -bound, bound)
    b = jax.random.uniform(kb, (1, fan_out), jnp.float32, -bound, bound)
    return w, b


if __name__ == "__main__":
    # Small env config consistent with the module's __init__.
    env_params = {"obs": 12, "goal": 4, "action": 4, "action_max": 1.0}
    B = 2
    D_in = env_params["obs"] + env_params["goal"]
    A = env_params["action"]

    key = jax.random.PRNGKey(0)
    k1, k2, k3, k4, k5, kx, ke = jax.random.split(key, 7)

    w1, b1 = init_linear(k1, D_in, HIDDEN)
    w2, b2 = init_linear(k2, HIDDEN, HIDDEN)
    w3, b3 = init_linear(k3, HIDDEN, HIDDEN)
    wmu, bmu = init_linear(k4, HIDDEN, A)
    wstd, bstd = init_linear(k5, HIDDEN, A)
    params = pack_params(w1, b1, w2, b2, w3, b3, wmu, bmu, wstd, bstd)

    x = jax.random.normal(kx, (B, D_in), jnp.float32)
    eps = jax.random.normal(ke, (B, A), jnp.float32)  # reparameterization noise

    actions, log_prob_actions = actor_forward(
        params, x, eps, env_params["action_max"], A)
    jax.block_until_ready((actions, log_prob_actions))

    assert actions.shape == (B, A)
    assert log_prob_actions.shape == (B,)
    assert bool(jnp.all(jnp.isfinite(actions)))
    assert bool(jnp.all(jnp.isfinite(log_prob_actions)))
    print("KERNEL_OK")
</pallas_src>

<mosaic_0001>
module attributes {stable_mosaic.version = 11 : i64} {
  func.func @actor_kernel(%arg0: i32, %arg1: memref<8x16xf32, #tpu.memory_space<vmem>>, %arg2: memref<8x4xf32, #tpu.memory_space<vmem>>, %arg3: memref<16x256xf32, #tpu.memory_space<vmem>>, %arg4: memref<1x256xf32, #tpu.memory_space<vmem>>, %arg5: memref<256x256xbf16, #tpu.memory_space<vmem>>, %arg6: memref<1x256xf32, #tpu.memory_space<vmem>>, %arg7: memref<256x256xbf16, #tpu.memory_space<vmem>>, %arg8: memref<1x256xf32, #tpu.memory_space<vmem>>, %arg9: memref<256x256xbf16, #tpu.memory_space<vmem>>, %arg10: memref<1x256xf32, #tpu.memory_space<vmem>>, %arg11: memref<8x128xf32, #tpu.memory_space<vmem>>) attributes {dimension_semantics = [#tpu.dimension_semantics<parallel>], iteration_bounds = array<i64: 1>, scalar_prefetch = 0 : i64, scratch_operands = 0 : i64, tpu.core_type = #tpu.core_type<tc>, window_params = [{transform_indices = @transform_0, window_bounds = array<i64: 8, 16>}, {transform_indices = @transform_1, window_bounds = array<i64: 8, 4>}, {pipeline_mode = #tpu.pipeline_mode<synchronous>, transform_indices = @transform_2, window_bounds = array<i64: 16, 256>}, {pipeline_mode = #tpu.pipeline_mode<synchronous>, transform_indices = @transform_3, window_bounds = array<i64: 1, 256>}, {pipeline_mode = #tpu.pipeline_mode<synchronous>, transform_indices = @transform_4, window_bounds = array<i64: 256, 256>}, {pipeline_mode = #tpu.pipeline_mode<synchronous>, transform_indices = @transform_5, window_bounds = array<i64: 1, 256>}, {pipeline_mode = #tpu.pipeline_mode<synchronous>, transform_indices = @transform_6, window_bounds = array<i64: 256, 256>}, {pipeline_mode = #tpu.pipeline_mode<synchronous>, transform_indices = @transform_7, window_bounds = array<i64: 1, 256>}, {pipeline_mode = #tpu.pipeline_mode<synchronous>, transform_indices = @transform_8, window_bounds = array<i64: 256, 256>}, {pipeline_mode = #tpu.pipeline_mode<synchronous>, transform_indices = @transform_9, window_bounds = array<i64: 1, 256>}, {transform_indices = @transform_10, window_bounds = array<i64: 8, 128>}]} {
    %c0 = arith.constant 0 : index
    %c0_0 = arith.constant 0 : index
    %0 = vector.load %arg1[%c0, %c0_0] : memref<8x16xf32, #tpu.memory_space<vmem>>, vector<8x16xf32>
    %c0_1 = arith.constant 0 : index
    %c0_2 = arith.constant 0 : index
    %1 = vector.load %arg3[%c0_1, %c0_2] : memref<16x256xf32, #tpu.memory_space<vmem>>, vector<16x256xf32>
    %cst = arith.constant dense<0.000000e+00> : vector<8x256xf32>
    %2 = tpu.matmul %0, %1, %cst {dimension_numbers = #tpu.dot_dimension_numbers<[1], [0], [0], [1], [0, 0, 1, 1], [], []>} : vector<8x16xf32>, vector<16x256xf32>, vector<8x256xf32> -> vector<8x256xf32>
    %c0_3 = arith.constant 0 : index
    %c0_4 = arith.constant 0 : index
    %3 = vector.load %arg4[%c0_3, %c0_4] : memref<1x256xf32, #tpu.memory_space<vmem>>, vector<1x256xf32>
    %4 = vector.broadcast %3 : vector<1x256xf32> to vector<8x256xf32>
    %5 = arith.addf %2, %4 : vector<8x256xf32>
    %cst_5 = arith.constant 0.000000e+00 : f32
    %6 = vector.broadcast %cst_5 : f32 to vector<8x256xf32>
    %7 = arith.maximumf %5, %6 : vector<8x256xf32>
    %8 = arith.truncf %7 : vector<8x256xf32> to vector<8x256xbf16>
    %c0_6 = arith.constant 0 : index
    %c0_7 = arith.constant 0 : index
    %9 = vector.load %arg5[%c0_6, %c0_7] : memref<256x256xbf16, #tpu.memory_space<vmem>>, vector<256x256xbf16>
    %cst_8 = arith.constant dense<0.000000e+00> : vector<8x256xf32>
    %10 = tpu.matmul %8, %9, %cst_8 {dimension_numbers = #tpu.dot_dimension_numbers<[1], [0], [0], [1], [0, 0, 1, 1], [], []>} : vector<8x256xbf16>, vector<256x256xbf16>, vector<8x256xf32> -> vector<8x256xf32>
    %c0_9 = arith.constant 0 : index
    %c0_10 = arith.constant 0 : index
    %11 = vector.load %arg6[%c0_9, %c0_10] : memref<1x256xf32, #tpu.memory_space<vmem>>, vector<1x256xf32>
    %12 = vector.broadcast %11 : vector<1x256xf32> to vector<8x256xf32>
    %13 = arith.addf %10, %12 : vector<8x256xf32>
    %cst_11 = arith.constant 0.000000e+00 : f32
    %14 = vector.broadcast %cst_11 : f32 to vector<8x256xf32>
    %15 = arith.maximumf %13, %14 : vector<8x256xf32>
    %16 = arith.truncf %15 : vector<8x256xf32> to vector<8x256xbf16>
    %c0_12 = arith.constant 0 : index
    %c0_13 = arith.constant 0 : index
    %17 = vector.load %arg7[%c0_12, %c0_13] : memref<256x256xbf16, #tpu.memory_space<vmem>>, vector<256x256xbf16>
    %cst_14 = arith.constant dense<0.000000e+00> : vector<8x256xf32>
    %18 = tpu.matmul %16, %17, %cst_14 {dimension_numbers = #tpu.dot_dimension_numbers<[1], [0], [0], [1], [0, 0, 1, 1], [], []>} : vector<8x256xbf16>, vector<256x256xbf16>, vector<8x256xf32> -> vector<8x256xf32>
    %c0_15 = arith.constant 0 : index
    %c0_16 = arith.constant 0 : index
    %19 = vector.load %arg8[%c0_15, %c0_16] : memref<1x256xf32, #tpu.memory_space<vmem>>, vector<1x256xf32>
    %20 = vector.broadcast %19 : vector<1x256xf32> to vector<8x256xf32>
    %21 = arith.addf %18, %20 : vector<8x256xf32>
    %cst_17 = arith.constant 0.000000e+00 : f32
    %22 = vector.broadcast %cst_17 : f32 to vector<8x256xf32>
    %23 = arith.maximumf %21, %22 : vector<8x256xf32>
    %24 = arith.truncf %23 : vector<8x256xf32> to vector<8x256xbf16>
    %c0_18 = arith.constant 0 : index
    %c0_19 = arith.constant 0 : index
    %25 = vector.load %arg9[%c0_18, %c0_19] : memref<256x256xbf16, #tpu.memory_space<vmem>>, vector<256x256xbf16>
    %cst_20 = arith.constant dense<0.000000e+00> : vector<8x256xf32>
    %26 = tpu.matmul %24, %25, %cst_20 {dimension_numbers = #tpu.dot_dimension_numbers<[1], [0], [0], [1], [0, 0, 1, 1], [], []>} : vector<8x256xbf16>, vector<256x256xbf16>, vector<8x256xf32> -> vector<8x256xf32>
    %c0_21 = arith.constant 0 : index
    %c0_22 = arith.constant 0 : index
    %27 = vector.load %arg10[%c0_21, %c0_22] : memref<1x256xf32, #tpu.memory_space<vmem>>, vector<1x256xf32>
    %28 = vector.broadcast %27 : vector<1x256xf32> to vector<8x256xf32>
    %29 = arith.addf %26, %28 : vector<8x256xf32>
    %30 = vector.extract_strided_slice %29 {offsets = [0, 0], sizes = [8, 4], strides = [1, 1]} : vector<8x256xf32> to vector<8x4xf32>
    %31 = vector.extract_strided_slice %29 {offsets = [0, 128], sizes = [8, 4], strides = [1, 1]} : vector<8x256xf32> to vector<8x4xf32>
    %cst_23 = arith.constant -2.000000e+01 : f32
    %cst_24 = arith.constant 2.000000e+00 : f32
    %32 = vector.broadcast %cst_23 : f32 to vector<8x4xf32>
    %33 = arith.maximumf %32, %31 : vector<8x4xf32>
    %34 = vector.broadcast %cst_24 : f32 to vector<8x4xf32>
    %35 = arith.minimumf %34, %33 : vector<8x4xf32>
    %36 = math.exp %35 : vector<8x4xf32>
    %c0_25 = arith.constant 0 : index
    %c0_26 = arith.constant 0 : index
    %37 = vector.load %arg2[%c0_25, %c0_26] : memref<8x4xf32, #tpu.memory_space<vmem>>, vector<8x4xf32>
    %38 = arith.mulf %36, %37 : vector<8x4xf32>
    %39 = arith.addf %30, %38 : vector<8x4xf32>
    %40 = arith.mulf %37, %37 : vector<8x4xf32>
    %cst_27 = arith.constant -5.000000e-01 : f32
    %41 = vector.broadcast %cst_27 : f32 to vector<8x4xf32>
    %42 = arith.mulf %41, %40 : vector<8x4xf32>
    %43 = arith.subf %42, %35 : vector<8x4xf32>
    %cst_28 = arith.constant 0.918938517 : f32
    %44 = vector.broadcast %cst_28 : f32 to vector<8x4xf32>
    %45 = arith.subf %43, %44 : vector<8x4xf32>
    %cst_29 = arith.constant 0.693147182 : f32
    %46 = vector.broadcast %cst_29 : f32 to vector<8x4xf32>
    %47 = arith.subf %46, %39 : vector<8x4xf32>
    %cst_30 = arith.constant -2.000000e+00 : f32
    %48 = vector.broadcast %cst_30 : f32 to vector<8x4xf32>
    %49 = arith.mulf %48, %39 : vector<8x4xf32>
    %cst_31 = arith.constant 0.000000e+00 : f32
    %50 = vector.broadcast %cst_31 : f32 to vector<8x4xf32>
    %51 = arith.maximumf %49, %50 : vector<8x4xf32>
    %52 = vector.broadcast %cst_31 : f32 to vector<8x4xf32>
    %53 = arith.subf %49, %52 : vector<8x4xf32>
    %54 = arith.cmpf one, %53, %53 : vector<8x4xf32>
    %55 = vector.broadcast %cst_31 : f32 to vector<8x4xf32>
    %56 = arith.addf %49, %55 : vector<8x4xf32>
    %57 = math.absf %53 : vector<8x4xf32>
    %cst_32 = arith.constant 0.000000e+00 : f32
    %58 = vector.broadcast %cst_32 : f32 to vector<8x4xf32>
    %59 = arith.subf %58, %57 : vector<8x4xf32>
    %60 = math.exp %59 : vector<8x4xf32>
    %61 = math.log1p %60 : vector<8x4xf32>
    %62 = arith.addf %51, %61 : vector<8x4xf32>
    %63 = arith.select %54, %56, %62 : vector<8x4xi1>, vector<8x4xf32>
    %64 = arith.subf %47, %63 : vector<8x4xf32>
    %cst_33 = arith.constant 2.000000e+00 : f32
    %65 = vector.broadcast %cst_33 : f32 to vector<8x4xf32>
    %66 = arith.mulf %65, %64 : vector<8x4xf32>
    %67 = arith.subf %45, %66 : vector<8x4xf32>
    %cst_34 = arith.constant dense<0.000000e+00> : vector<8xf32>
    %68 = vector.multi_reduction <add>, %67, %cst_34 [1] : vector<8x4xf32> to vector<8xf32>
    %69 = vector.shape_cast %68 : vector<8xf32> to vector<8x1xf32>
    %70 = math.tanh %39 : vector<8x4xf32>
    %cst_35 = arith.constant 1.000000e+00 : f32
    %71 = vector.broadcast %cst_35 : f32 to vector<8x4xf32>
    %72 = arith.mulf %71, %70 : vector<8x4xf32>
    %cst_36 = arith.constant 0.000000e+00 : f32
    %73 = vector.broadcast %cst_36 : f32 to vector<8x128xf32>
    %c0_37 = arith.constant 0 : index
    %c0_38 = arith.constant 0 : index
    %74 = vector.load %arg11[%c0_37, %c0_38] : memref<8x128xf32, #tpu.memory_space<vmem>>, vector<8x128xf32>
    tpu.vector_store %arg11[%c0_37, %c0_38], %73 {strides = array<i32>} : memref<8x128xf32, #tpu.memory_space<vmem>>, vector<8x128xf32>,
    %c0_39 = arith.constant 0 : index
    %c0_40 = arith.constant 0 : index
    %75 = vector.load %arg11[%c0_39, %c0_40] : memref<8x128xf32, #tpu.memory_space<vmem>>, vector<8x4xf32>
    tpu.vector_store %arg11[%c0_39, %c0_40], %72 {strides = array<i32>} : memref<8x128xf32, #tpu.memory_space<vmem>>, vector<8x4xf32>,
    %c0_41 = arith.constant 0 : index
    %c4 = arith.constant 4 : index
    %76 = vector.load %arg11[%c0_41, %c4] : memref<8x128xf32, #tpu.memory_space<vmem>>, vector<8x1xf32>
    tpu.vector_store %arg11[%c0_41, %c4], %69 {strides = array<i32>} : memref<8x128xf32, #tpu.memory_space<vmem>>, vector<8x1xf32>,
    return
  }
  func.func @transform_0(%arg0: i32) -> (i32, i32) {
    %c0_i32 = arith.constant 0 : i32
    %c0_i32_0 = arith.constant 0 : i32
    return %arg0, %c0_i32 : i32, i32
  }
  func.func @transform_1(%arg0: i32) -> (i32, i32) {
    %c0_i32 = arith.constant 0 : i32
    %c0_i32_0 = arith.constant 0 : i32
    return %arg0, %c0_i32 : i32, i32
  }
  func.func @transform_2(%arg0: i32) -> (i32, i32) {
    %c0_i32 = arith.constant 0 : i32
    %c0_i32_0 = arith.constant 0 : i32
    %c0_i32_1 = arith.constant 0 : i32
    return %c0_i32, %c0_i32_0 : i32, i32
  }
  func.func @transform_3(%arg0: i32) -> (i32, i32) {
    %c0_i32 = arith.constant 0 : i32
    %c0_i32_0 = arith.constant 0 : i32
    %c0_i32_1 = arith.constant 0 : i32
    return %c0_i32, %c0_i32_0 : i32, i32
  }
  func.func @transform_4(%arg0: i32) -> (i32, i32) {
    %c0_i32 = arith.constant 0 : i32
    %c0_i32_0 = arith.constant 0 : i32
    %c0_i32_1 = arith.constant 0 : i32
    return %c0_i32, %c0_i32_0 : i32, i32
  }
  func.func @transform_5(%arg0: i32) -> (i32, i32) {
    %c0_i32 = arith.constant 0 : i32
    %c0_i32_0 = arith.constant 0 : i32
    %c0_i32_1 = arith.constant 0 : i32
    return %c0_i32, %c0_i32_0 : i32, i32
  }
  func.func @transform_6(%arg0: i32) -> (i32, i32) {
    %c0_i32 = arith.constant 0 : i32
    %c0_i32_0 = arith.constant 0 : i32
    %c0_i32_1 = arith.constant 0 : i32
    return %c0_i32, %c0_i32_0 : i32, i32
  }
  func.func @transform_7(%arg0: i32) -> (i32, i32) {
    %c0_i32 = arith.constant 0 : i32
    %c0_i32_0 = arith.constant 0 : i32
    %c0_i32_1 = arith.constant 0 : i32
    return %c0_i32, %c0_i32_0 : i32, i32
  }
  func.func @transform_8(%arg0: i32) -> (i32, i32) {
    %c0_i32 = arith.constant 0 : i32
    %c0_i32_0 = arith.constant 0 : i32
    %c0_i32_1 = arith.constant 0 : i32
    return %c0_i32, %c0_i32_0 : i32, i32
  }
  func.func @transform_9(%arg0: i32) -> (i32, i32) {
    %c0_i32 = arith.constant 0 : i32
    %c0_i32_0 = arith.constant 0 : i32
    %c0_i32_1 = arith.constant 0 : i32
    return %c0_i32, %c0_i32_0 : i32, i32
  }
  func.func @transform_10(%arg0: i32) -> (i32, i32) {
    %c0_i32 = arith.constant 0 : i32
    %c0_i32_0 = arith.constant 0 : i32
    return %arg0, %c0_i32 : i32, i32
  }
}

</mosaic_0001>

<llo_original>
// kernel: tpu_custom_call.1
$region0: #{tpu_custom_call.1}
  #allocation0 [shape = 'u32[]', space=smem, size = 0x4, offset = 0x4, fixed_abs, tag = 'smem constant byte address 0x4 - core index']
  #allocation1 [shape = 'u32[144,128]{1,0:T(1,128)}', space=vmem, size = 0x12000, scoped, tag = 'internal scratch']
  %s0 = inlined_call_operand.vmem [shape: f32[8,16], index: 0, kind: input, shape index: {}]
  %s1 = inlined_call_operand.vmem [shape: f32[8,4], index: 1, kind: input, shape index: {}]
  %s2 = inlined_call_operand.hbm [shape: f32[16,256], index: 2, kind: input, shape index: {}]
  %s3 = inlined_call_operand.vmem [shape: f32[1,256], index: 3, kind: input, shape index: {}]
  %s4 = inlined_call_operand.hbm [shape: bf16[256,256], index: 4, kind: input, shape index: {}]
  %s5 = inlined_call_operand.vmem [shape: f32[1,256], index: 5, kind: input, shape index: {}]
  %s6 = inlined_call_operand.hbm [shape: bf16[256,256], index: 6, kind: input, shape index: {}]
  %s7 = inlined_call_operand.vmem [shape: f32[1,256], index: 7, kind: input, shape index: {}]
  %s8 = inlined_call_operand.hbm [shape: bf16[256,256], index: 8, kind: input, shape index: {}]
  %s9 = inlined_call_operand.vmem [shape: f32[1,256], index: 9, kind: input, shape index: {}]
  %s10 = inlined_call_operand.hbm [shape: f32[8,128], index: 10, kind: output, shape index: {}]
  %s11 = sld [smem:[#allocation0]]
  $region66: #{tpu_custom_call.1} parent=0
    _
  %s13 = ssub.s32 1, %s11
  %s14 = scalar_select 0, %s13, %s11
  $region1: #{tpu_custom_call.1} parent=0
    #allocation2 [shape = 'u8[16384]{0}', space=vmem, size = 0x4000, scoped, tag = 'input window, operand 2, single buffered']
    #allocation3 [shape = 's32[1]{0}', space=sflag, size = 0x4, scoped, tag = 'scoped memory for tpu_custom_call.1']
    #allocation4 [shape = 's32[1]{0}', space=sflag, size = 0x4, scoped, tag = 'scoped memory for tpu_custom_call.1']
    #allocation5 [shape = 'u8[131072]{0}', space=vmem, size = 0x20000, scoped, tag = 'input window, operand 4, single buffered']
    #allocation6 [shape = 's32[1]{0}', space=sflag, size = 0x4, scoped, tag = 'scoped memory for tpu_custom_call.1']
    #allocation7 [shape = 'u8[131072]{0}', space=vmem, size = 0x20000, scoped, tag = 'input window, operand 6, single buffered']
    #allocation8 [shape = 'u8[131072]{0}', space=vmem, size = 0x20000, scoped, tag = 'input window, operand 8, single buffered']
    #allocation9 [shape = 's32[1]{0}', space=sflag, size = 0x4, scoped, tag = 'scoped memory for tpu_custom_call.1']
    #allocation10 [shape = 'u8[4096]{0}', space=vmem, size = 0x1000, scoped, tag = 'output window, operand 0, single buffered']
    %15 = vsyncpa [#allocation3], 0
    %16 = vsyncpa [#allocation6], 0
    %17 = vsyncpa [#allocation9], 0
    %18 = vsyncpa [#allocation4], 0
    // Predicated region
    $region2: #{tpu_custom_call.1} parent=1 // pred_check
      _
    $region3: #{tpu_custom_call.1} parent=1 // pred_check_branch
      %20 = sbr.rel (0) target = $region5
    $region4: #{tpu_custom_call.1} parent=1 // pred_region
      _
    $region5: #{tpu_custom_call.1} parent=1 // pred_fallthru
      _
    // Predicated region
    $region6: #{tpu_custom_call.1} parent=1 // pred_check
      _
    $region7: #{tpu_custom_call.1} parent=1 // pred_check_branch
      %22 = sbr.rel (0) target = $region9
    $region8: #{tpu_custom_call.1} parent=1 // pred_region
      _
    $region9: #{tpu_custom_call.1} parent=1 // pred_fallthru
      _
    // Predicated region
    $region10: #{tpu_custom_call.1} parent=1 // pred_check
      _
    $region11: #{tpu_custom_call.1} parent=1 // pred_check_branch
      %24 = sbr.rel (0) target = $region13
    $region12: #{tpu_custom_call.1} parent=1 // pred_region
      %s26 = ssub.s32 512, 512
      %27 = vsyncadd [#allocation3], %s26
      %s28 = sshll.u32 [#allocation2], 4
      %s29 = int_to_ptr.vmem [resolvable:$true] %s28
      %34 = dma.hbm_to_vmem [thread:$0]  %s2, 512, %s29, [#allocation3], 256, 256, 16
    $region13: #{tpu_custom_call.1} parent=1 // pred_fallthru
      _
    // Predicated region
    $region14: #{tpu_custom_call.1} parent=1 // pred_check
      _
    $region15: #{tpu_custom_call.1} parent=1 // pred_check_branch
      %36 = sbr.rel (0) target = $region17
    $region16: #{tpu_custom_call.1} parent=1 // pred_region
      _
    $region17: #{tpu_custom_call.1} parent=1 // pred_fallthru
      _
    // Predicated region
    $region18: #{tpu_custom_call.1} parent=1 // pred_check
      _
    $region19: #{tpu_custom_call.1} parent=1 // pred_check_branch
      %38 = sbr.rel (0) target = $region21
    $region20: #{tpu_custom_call.1} parent=1 // pred_region
      %s40 = ssub.s32 4096, 4096
      %41 = vsyncadd [#allocation6], %s40
      %s42 = sshll.u32 [#allocation5], 4
      %s43 = int_to_ptr.vmem [resolvable:$true] %s42
      %48 = dma.hbm_to_vmem [thread:$0]  %s4, 4096, %s43, [#allocation6], 128, 128, 8
    $region21: #{tpu_custom_call.1} parent=1 // pred_fallthru
      _
    // Predicated region
    $region22: #{tpu_custom_call.1} parent=1 // pred_check
      _
    $region23: #{tpu_custom_call.1} parent=1 // pred_check_branch
      %50 = sbr.rel (0) target = $region25
    $region24: #{tpu_custom_call.1} parent=1 // pred_region
      _
    $region25: #{tpu_custom_call.1} parent=1 // pred_fallthru
      _
    // Predicated region
    $region26: #{tpu_custom_call.1} parent=1 // pred_check
      _
    $region27: #{tpu_custom_call.1} parent=1 // pred_check_branch
      %52 = sbr.rel (0) target = $region29
    $region28: #{tpu_custom_call.1} parent=1 // pred_region
      %s54 = ssub.s32 4096, 4096
      %55 = vsyncadd [#allocation6], %s54
      %s56 = sshll.u32 [#allocation7], 4
      %s57 = int_to_ptr.vmem [resolvable:$true] %s56
      %62 = dma.hbm_to_vmem [thread:$0]  %s6, 4096, %s57, [#allocation6], 128, 128, 8
    $region29: #{tpu_custom_call.1} parent=1 // pred_fallthru
      _
    // Predicated region
    $region30: #{tpu_custom_call.1} parent=1 // pred_check
      _
    $region31: #{tpu_custom_call.1} parent=1 // pred_check_branch
      %64 = sbr.rel (0) target = $region33
    $region32: #{tpu_custom_call.1} parent=1 // pred_region
      _
    $region33: #{tpu_custom_call.1} parent=1 // pred_fallthru
      _
    // Predicated region
    $region34: #{tpu_custom_call.1} parent=1 // pred_check
      _
    $region35: #{tpu_custom_call.1} parent=1 // pred_check_branch
      %66 = sbr.rel (0) target = $region37
    $region36: #{tpu_custom_call.1} parent=1 // pred_region
      %s68 = ssub.s32 4096, 4096
      %69 = vsyncadd [#allocation9], %s68
      %s70 = sshll.u32 [#allocation8], 4
      %s71 = int_to_ptr.vmem [resolvable:$true] %s70
      %76 = dma.hbm_to_vmem [thread:$0]  %s8, 4096, %s71, [#allocation9], 128, 128, 8
    $region37: #{tpu_custom_call.1} parent=1 // pred_fallthru
      _
    // Predicated region
    $region38: #{tpu_custom_call.1} parent=1 // pred_check
      _
    $region39: #{tpu_custom_call.1} parent=1 // pred_check_branch
      %78 = sbr.rel (0) target = $region41
    $region40: #{tpu_custom_call.1} parent=1 // pred_region
      _
    $region41: #{tpu_custom_call.1} parent=1 // pred_fallthru
      _
    // Predicated region
    $region42: #{tpu_custom_call.1} parent=1 // pred_check
      _
    $region43: #{tpu_custom_call.1} parent=1 // pred_check_branch
      %80 = sbr.rel (0) target = $region45
    $region44: #{tpu_custom_call.1} parent=1 // pred_region
      %81 = dma.done [#allocation3], 512
    $region45: #{tpu_custom_call.1} parent=1 // pred_fallthru
      _
    // Predicated region
    $region46: #{tpu_custom_call.1} parent=1 // pred_check
      _
    $region47: #{tpu_custom_call.1} parent=1 // pred_check_branch
      %83 = sbr.rel (0) target = $region49
    $region48: #{tpu_custom_call.1} parent=1 // pred_region
      %84 = dma.done [#allocation6], 4096
    $region49: #{tpu_custom_call.1} parent=1 // pred_fallthru
      _
    // Predicated region
    $region50: #{tpu_custom_call.1} parent=1 // pred_check
      _
    $region51: #{tpu_custom_call.1} parent=1 // pred_check_branch
      %86 = sbr.rel (0) target = $region53
    $region52: #{tpu_custom_call.1} parent=1 // pred_region
      %87 = dma.done [#allocation6], 4096
    $region53: #{tpu_custom_call.1} parent=1 // pred_fallthru
      _
    // Predicated region
    $region54: #{tpu_custom_call.1} parent=1 // pred_check
      _
    $region55: #{tpu_custom_call.1} parent=1 // pred_check_branch
      %89 = sbr.rel (0) target = $region57
    $region56: #{tpu_custom_call.1} parent=1 // pred_region
      %90 = dma.done [#allocation9], 4096
    $region57: #{tpu_custom_call.1} parent=1 // pred_fallthru
      _
    %v91 = vld [vmem:[%s0] sm:$0xff]
    %v92 = vld [vmem:[#allocation2] sm:$0xff]
    %v93 = vld [vmem:[#allocation2 + $0x8] sm:$0xff]
    %v94 = vld [vmem:[#allocation2 + $0x10] sm:$0xff]
    %v95 = vld [vmem:[#allocation2 + $0x18] sm:$0xff]
    %v96 = vld [vmem:[%s3] sm:$0x3]
    %v98 = vlaneseq
    %v99 = vshrl.u32 %v98, 7
    %v100 = vsub.s32 0, %v99
    %v101 = vrot.slane %v96, %v100
    %v102 = vlaneseq
    %v103 = vshrl.u32 %v102, 7
    %v104 = vsub.s32 1, %v103
    %v105 = vrot.slane %v96, %v104
    %vm108 = vcmask 130048
    %v110 = vsel %vm108, %v91, 0
    %112 = vmatprep.subr.mxu0 0.0
    %113 = vmatpush1.msra.mxu0 0.0
    %114 = vmatprep.subr.mxu0 0.0
    %115 = vmatpush1.msra.mxu0 0.0
    %116 = vmatprep.subr.mxu0 0.0
    %117 = vmatpush1.msra.mxu0 0.0
    %118 = vmatprep.subr.mxu0 0.0
    %119 = vmatpush1.msra.mxu0 0.0
    %120 = vmatprep.subr.mxu0 0.0
    %121 = vmatpush1.msra.mxu0 0.0
    %122 = vmatprep.subr.mxu0 0.0
    %123 = vmatpush1.msra.mxu0 0.0
    %124 = vmatprep.subr.mxu0 0.0
    %125 = vmatpush1.msra.mxu0 0.0
    %126 = vmatprep.subr.mxu0 0.0
    %127 = vmatpush1.msra.mxu0 0.0
    %128 = vmatprep.subr.mxu0 0.0
    %129 = vmatpush1.msra.mxu0 0.0
    %130 = vmatprep.subr.mxu0 0.0
    %131 = vmatpush1.msra.mxu0 0.0
    %132 = vmatprep.subr.mxu0 0.0
    %133 = vmatpush1.msra.mxu0 0.0
    %134 = vmatprep.subr.mxu0 0.0
    %135 = vmatpush1.msra.mxu0 0.0
    %136 = vmatprep.subr.mxu0 0.0
    %137 = vmatpush1.msra.mxu0 0.0
    %138 = vmatprep.subr.mxu0 0.0
    %139 = vmatpush1.msra.mxu0 0.0
    %140 = vmatprep.subr.mxu0 %v95
    %141 = vmatpush1.msra.mxu0 %v94
    %142 = vmatprep.subr.mxu0 %v93
    %143 = vmatpush1.msra.mxu0 %v92
    %144 = vmatprep.subr.mxu0 0.0
    %145 = vmatpush2.msra.mxu0 0.0
    %146 = vmatprep.subr.mxu0 0.0
    %147 = vmatpush2.msra.mxu0 0.0
    %148 = vmatprep.subr.mxu0 0.0
    %149 = vmatpush2.msra.mxu0 0.0
    %150 = vmatprep.subr.mxu0 0.0
    %151 = vmatpush2.msra.mxu0 0.0
    %152 = vmatprep.subr.mxu0 0.0
    %153 = vmatpush2.msra.mxu0 0.0
    %154 = vmatprep.subr.mxu0 0.0
    %155 = vmatpush2.msra.mxu0 0.0
    %156 = vmatprep.subr.mxu0 0.0
    %157 = vmatpush2.msra.mxu0 0.0
    %158 = vmatprep.subr.mxu0 0.0
    %159 = vmatpush2.msra.mxu0 0.0
    %160 = vmatprep.subr.mxu0 0.0
    %161 = vmatpush2.msra.mxu0 0.0
    %162 = vmatprep.subr.mxu0 0.0
    %163 = vmatpush2.msra.mxu0 0.0
    %164 = vmatprep.subr.mxu0 0.0
    %165 = vmatpush2.msra.mxu0 0.0
    %166 = vmatprep.subr.mxu0 0.0
    %167 = vmatpush2.msra.mxu0 0.0
    %168 = vmatprep.subr.mxu0 0.0
    %169 = vmatpush2.msra.mxu0 0.0
    %170 = vmatprep.subr.mxu0 0.0
    %171 = vmatpush2.msra.mxu0 0.0
    %172 = vmatprep.subr.mxu0 0.0
    %173 = vmatpush2.msra.mxu0 0.0
    %174 = vmatprep.subr.mxu0 0.0
    %175 = vmatpush2.msra.mxu0 0.0
    %176 = vmatprep.mubr.f32.mxu0 0.0
    %177 = vmatmul.mubr.f32.gmra.mxu0 %v110
    %v178 = vpop.f32.mrf.mxu0
    %v179 = vadd.f32 %v101, %v178
    %v180 = vpop.f32.mrf.mxu0
    %v181 = vadd.f32 %v105, %v180
    %182 = vdwg.mxu0
    %v183 = vmax.f32 %v179, 0.0
    %v184 = vmax.f32 %v181, 0.0
    %v185 = vpack.c.bf16 %v183, %v183
    %v186 = vpack.c.bf16 %v184, %v184
    %v187 = vld [vmem:[#allocation5] sm:$0xff]
    %v188 = vld [vmem:[#allocation5 + $0x8] sm:$0xff]
    %v189 = vld [vmem:[#allocation5 + $0x10] sm:$0xff]
    %v190 = vld [vmem:[#allocation5 + $0x18] sm:$0xff]
    %v191 = vld [vmem:[#allocation5 + $0x20] sm:$0xff]
    %v192 = vld [vmem:[#allocation5 + $0x28] sm:$0xff]
    %v193 = vld [vmem:[#allocation5 + $0x30] sm:$0xff]
    %v194 = vld [vmem:[#allocation5 + $0x38] sm:$0xff]
    %v195 = vld [vmem:[#allocation5 + $0x40] sm:$0xff]
    %v196 = vld [vmem:[#allocation5 + $0x48] sm:$0xff]
    %v197 = vld [vmem:[#allocation5 + $0x50] sm:$0xff]
    %v198 = vld [vmem:[#allocation5 + $0x58] sm:$0xff]
    %v199 = vld [vmem:[#allocation5 + $0x60] sm:$0xff]
    %v200 = vld [vmem:[#allocation5 + $0x68] sm:$0xff]
    %v201 = vld [vmem:[#allocation5 + $0x70] sm:$0xff]
    %v202 = vld [vmem:[#allocation5 + $0x78] sm:$0xff]
    %v203 = vld [vmem:[#allocation5 + $0x80] sm:$0xff]
    %v204 = vld [vmem:[#allocation5 + $0x88] sm:$0xff]
    %v205 = vld [vmem:[#allocation5 + $0x90] sm:$0xff]
    %v206 = vld [vmem:[#allocation5 + $0x98] sm:$0xff]
    %v207 = vld [vmem:[#allocation5 + $0xa0] sm:$0xff]
    %v208 = vld [vmem:[#allocation5 + $0xa8] sm:$0xff]
    %v209 = vld [vmem:[#allocation5 + $0xb0] sm:$0xff]
    %v210 = vld [vmem:[#allocation5 + $0xb8] sm:$0xff]
    %v211 = vld [vmem:[#allocation5 + $0xc0] sm:$0xff]
    %v212 = vld [vmem:[#allocation5 + $0xc8] sm:$0xff]
    %v213 = vld [vmem:[#allocation5 + $0xd0] sm:$0xff]
    %v214 = vld [vmem:[#allocation5 + $0xd8] sm:$0xff]
    %v215 = vld [vmem:[#allocation5 + $0xe0] sm:$0xff]
    %v216 = vld [vmem:[#allocation5 + $0xe8] sm:$0xff]
    %v217 = vld [vmem:[#allocation5 + $0xf0] sm:$0xff]
    %v218 = vld [vmem:[#allocation5 + $0xf8] sm:$0xff]
    %v219 = vld [vmem:[%s5] sm:$0x3]
    %v221 = vlaneseq
    %v222 = vshrl.u32 %v221, 7
    %v223 = vsub.s32 0, %v222
    %v224 = vrot.slane %v219, %v223
    %v225 = vlaneseq
    %v226 = vshrl.u32 %v225, 7
    %v227 = vsub.s32 1, %v226
    %v228 = vrot.slane %v219, %v227
    %v263 = vunpack.c.l.b16 %v187
    %v264 = vunpack.c.h.b16 %v187
    %v265 = vunpack.c.l.b16 %v188
    %v266 = vunpack.c.h.b16 %v188
    %v267 = vunpack.c.l.b16 %v189
    %v268 = vunpack.c.h.b16 %v189
    %v269 = vunpack.c.l.b16 %v190
    %v270 = vunpack.c.h.b16 %v190
    %v271 = vunpack.c.l.b16 %v191
    %v272 = vunpack.c.h.b16 %v191
    %v273 = vunpack.c.l.b16 %v192
    %v274 = vunpack.c.h.b16 %v192
    %v275 = vunpack.c.l.b16 %v193
    %v276 = vunpack.c.h.b16 %v193
    %v277 = vunpack.c.l.b16 %v194
    %v278 = vunpack.c.h.b16 %v194
    %v279 = vunpack.c.l.b16 %v195
    %v280 = vunpack.c.h.b16 %v195
    %v281 = vunpack.c.l.b16 %v196
    %v282 = vunpack.c.h.b16 %v196
    %v283 = vunpack.c.l.b16 %v197
    %v284 = vunpack.c.h.b16 %v197
    %v285 = vunpack.c.l.b16 %v198
    %v286 = vunpack.c.h.b16 %v198
    %v287 = vunpack.c.l.b16 %v199
    %v288 = vunpack.c.h.b16 %v199
    %v289 = vunpack.c.l.b16 %v200
    %v290 = vunpack.c.h.b16 %v200
    %v291 = vunpack.c.l.b16 %v201
    %v292 = vunpack.c.h.b16 %v201
    %v293 = vunpack.c.l.b16 %v202
    %v294 = vunpack.c.h.b16 %v202
    %v295 = vunpack.c.l.b16 %v203
    %v296 = vunpack.c.h.b16 %v203
    %v297 = vunpack.c.l.b16 %v204
    %v298 = vunpack.c.h.b16 %v204
    %v299 = vunpack.c.l.b16 %v205
    %v300 = vunpack.c.h.b16 %v205
    %v301 = vunpack.c.l.b16 %v206
    %v302 = vunpack.c.h.b16 %v206
    %v303 = vunpack.c.l.b16 %v207
    %v304 = vunpack.c.h.b16 %v207
    %v305 = vunpack.c.l.b16 %v208
    %v306 = vunpack.c.h.b16 %v208
    %v307 = vunpack.c.l.b16 %v209
    %v308 = vunpack.c.h.b16 %v209
    %v309 = vunpack.c.l.b16 %v210
    %v310 = vunpack.c.h.b16 %v210
    %v311 = vunpack.c.l.b16 %v211
    %v312 = vunpack.c.h.b16 %v211
    %v313 = vunpack.c.l.b16 %v212
    %v314 = vunpack.c.h.b16 %v212
    %v315 = vunpack.c.l.b16 %v213
    %v316 = vunpack.c.h.b16 %v213
    %v317 = vunpack.c.l.b16 %v214
    %v318 = vunpack.c.h.b16 %v214
    %v319 = vunpack.c.l.b16 %v215
    %v320 = vunpack.c.h.b16 %v215
    %v321 = vunpack.c.l.b16 %v216
    %v322 = vunpack.c.h.b16 %v216
    %v323 = vunpack.c.l.b16 %v217
    %v324 = vunpack.c.h.b16 %v217
    %v325 = vunpack.c.l.b16 %v218
    %v326 = vunpack.c.h.b16 %v218
    %v327 = vpack.c.b16 %v265, %v263
    %v328 = vpack.c.b16 %v266, %v264
    %v329 = vpack.c.b16 %v269, %v267
    %v330 = vpack.c.b16 %v270, %v268
    %v331 = vpack.c.b16 %v273, %v271
    %v332 = vpack.c.b16 %v274, %v272
    %v333 = vpack.c.b16 %v277, %v275
    %v334 = vpack.c.b16 %v278, %v276
    %v335 = vpack.c.b16 %v281, %v279
    %v336 = vpack.c.b16 %v282, %v280
    %v337 = vpack.c.b16 %v285, %v283
    %v338 = vpack.c.b16 %v286, %v284
    %v339 = vpack.c.b16 %v289, %v287
    %v340 = vpack.c.b16 %v290, %v288
    %v341 = vpack.c.b16 %v293, %v291
    %v342 = vpack.c.b16 %v294, %v292
    %v343 = vpack.c.b16 %v297, %v295
    %v344 = vpack.c.b16 %v298, %v296
    %v345 = vpack.c.b16 %v301, %v299
    %v346 = vpack.c.b16 %v302, %v300
    %v347 = vpack.c.b16 %v305, %v303
    %v348 = vpack.c.b16 %v306, %v304
    %v349 = vpack.c.b16 %v309, %v307
    %v350 = vpack.c.b16 %v310, %v308
    %v351 = vpack.c.b16 %v313, %v311
    %v352 = vpack.c.b16 %v314, %v312
    %v353 = vpack.c.b16 %v317, %v315
    %v354 = vpack.c.b16 %v318, %v316
    %v355 = vpack.c.b16 %v321, %v319
    %v356 = vpack.c.b16 %v322, %v320
    %v357 = vpack.c.b16 %v325, %v323
    %v358 = vpack.c.b16 %v326, %v324
    %391 = vmatprep.subr.bf16.mxu0 %v342
    %392 = vmatpush1.bf16.msra.mxu0 %v341
    %393 = vmatprep.subr.bf16.mxu0 %v340
    %394 = vmatpush1.bf16.msra.mxu0 %v339
    %395 = vmatprep.subr.bf16.mxu0 %v338
    %396 = vmatpush1.bf16.msra.mxu0 %v337
    %397 = vmatprep.subr.bf16.mxu0 %v336
    %398 = vmatpush1.bf16.msra.mxu0 %v335
    %399 = vmatprep.subr.bf16.mxu0 %v334
    %400 = vmatpush1.bf16.msra.mxu0 %v333
    %401 = vmatprep.subr.bf16.mxu0 %v332
    %402 = vmatpush1.bf16.msra.mxu0 %v331
    %403 = vmatprep.subr.bf16.mxu0 %v330
    %404 = vmatpush1.bf16.msra.mxu0 %v329
    %405 = vmatprep.subr.bf16.mxu0 %v328
    %406 = vmatpush1.bf16.msra.mxu0 %v327
    %407 = vmatprep.subr.bf16.mxu0 %v358
    %408 = vmatpush2.bf16.msra.mxu0 %v357
    %409 = vmatprep.subr.bf16.mxu0 %v356
    %410 = vmatpush2.bf16.msra.mxu0 %v355
    %411 = vmatprep.subr.bf16.mxu0 %v354
    %412 = vmatpush2.bf16.msra.mxu0 %v353
    %413 = vmatprep.subr.bf16.mxu0 %v352
    %414 = vmatpush2.bf16.msra.mxu0 %v351
    %415 = vmatprep.subr.bf16.mxu0 %v350
    %416 = vmatpush2.bf16.msra.mxu0 %v349
    %417 = vmatprep.subr.bf16.mxu0 %v348
    %418 = vmatpush2.bf16.msra.mxu0 %v347
    %419 = vmatprep.subr.bf16.mxu0 %v346
    %420 = vmatpush2.bf16.msra.mxu0 %v345
    %421 = vmatprep.subr.bf16.mxu0 %v344
    %422 = vmatpush2.bf16.msra.mxu0 %v343
    %423 = vmatprep.mubr.bf16.mxu0 %v186
    %424 = vmatmul.mubr.bf16.gmra.mxu0 %v185
    %v425 = vpop.f32.mrf.mxu0
    %v426 = vadd.f32 %v224, %v425
    %v427 = vpop.f32.mrf.mxu0
    %v428 = vadd.f32 %v228, %v427
    %v429 = vpop.f32.mrf.mxu0
    %v430 = vpop.f32.mrf.mxu0
    %431 = vdwg.mxu0
    %v432 = vmax.f32 %v426, 0.0
    %v433 = vmax.f32 %v428, 0.0
    %v434 = vpack.c.bf16 %v432, %v432
    %v435 = vpack.c.bf16 %v433, %v433
    %v436 = vld [vmem:[#allocation7] sm:$0xff]
    %v437 = vld [vmem:[#allocation7 + $0x8] sm:$0xff]
    %v438 = vld [vmem:[#allocation7 + $0x10] sm:$0xff]
    %v439 = vld [vmem:[#allocation7 + $0x18] sm:$0xff]
    %v440 = vld [vmem:[#allocation7 + $0x20] sm:$0xff]
    %v441 = vld [vmem:[#allocation7 + $0x28] sm:$0xff]
    %v442 = vld [vmem:[#allocation7 + $0x30] sm:$0xff]
    %v443 = vld [vmem:[#allocation7 + $0x38] sm:$0xff]
    %v444 = vld [vmem:[#allocation7 + $0x40] sm:$0xff]
    %v445 = vld [vmem:[#allocation7 + $0x48] sm:$0xff]
    %v446 = vld [vmem:[#allocation7 + $0x50] sm:$0xff]
    %v447 = vld [vmem:[#allocation7 + $0x58] sm:$0xff]
    %v448 = vld [vmem:[#allocation7 + $0x60] sm:$0xff]
    %v449 = vld [vmem:[#allocation7 + $0x68] sm:$0xff]
    %v450 = vld [vmem:[#allocation7 + $0x70] sm:$0xff]
    %v451 = vld [vmem:[#allocation7 + $0x78] sm:$0xff]
    %v452 = vld [vmem:[#allocation7 + $0x80] sm:$0xff]
    %v453 = vld [vmem:[#allocation7 + $0x88] sm:$0xff]
    %v454 = vld [vmem:[#allocation7 + $0x90] sm:$0xff]
    %v455 = vld [vmem:[#allocation7 + $0x98] sm:$0xff]
    %v456 = vld [vmem:[#allocation7 + $0xa0] sm:$0xff]
    %v457 = vld [vmem:[#allocation7 + $0xa8] sm:$0xff]
    %v458 = vld [vmem:[#allocation7 + $0xb0] sm:$0xff]
    %v459 = vld [vmem:[#allocation7 + $0xb8] sm:$0xff]
    %v460 = vld [vmem:[#allocation7 + $0xc0] sm:$0xff]
    %v461 = vld [vmem:[#allocation7 + $0xc8] sm:$0xff]
    %v462 = vld [vmem:[#allocation7 + $0xd0] sm:$0xff]
    %v463 = vld [vmem:[#allocation7 + $0xd8] sm:$0xff]
    %v464 = vld [vmem:[#allocation7 + $0xe0] sm:$0xff]
    %v465 = vld [vmem:[#allocation7 + $0xe8] sm:$0xff]
    %v466 = vld [vmem:[#allocation7 + $0xf0] sm:$0xff]
    %v467 = vld [vmem:[#allocation7 + $0xf8] sm:$0xff]
    %v468 = vld [vmem:[%s7] sm:$0x3]
    %v470 = vlaneseq
    %v471 = vshrl.u32 %v470, 7
    %v472 = vsub.s32 0, %v471
    %v473 = vrot.slane %v468, %v472
    %v474 = vlaneseq
    %v475 = vshrl.u32 %v474, 7
    %v476 = vsub.s32 1, %v475
    %v477 = vrot.slane %v468, %v476
    %v512 = vunpack.c.l.b16 %v436
    %v513 = vunpack.c.h.b16 %v436
    %v514 = vunpack.c.l.b16 %v437
    %v515 = vunpack.c.h.b16 %v437
    %v516 = vunpack.c.l.b16 %v438
    %v517 = vunpack.c.h.b16 %v438
    %v518 = vunpack.c.l.b16 %v439
    %v519 = vunpack.c.h.b16 %v439
    %v520 = vunpack.c.l.b16 %v440
    %v521 = vunpack.c.h.b16 %v440
    %v522 = vunpack.c.l.b16 %v441
    %v523 = vunpack.c.h.b16 %v441
    %v524 = vunpack.c.l.b16 %v442
    %v525 = vunpack.c.h.b16 %v442
    %v526 = vunpack.c.l.b16 %v443
    %v527 = vunpack.c.h.b16 %v443
    %v528 = vunpack.c.l.b16 %v444
    %v529 = vunpack.c.h.b16 %v444
    %v530 = vunpack.c.l.b16 %v445
    %v531 = vunpack.c.h.b16 %v445
    %v532 = vunpack.c.l.b16 %v446
    %v533 = vunpack.c.h.b16 %v446
    %v534 = vunpack.c.l.b16 %v447
    %v535 = vunpack.c.h.b16 %v447
    %v536 = vunpack.c.l.b16 %v448
    %v537 = vunpack.c.h.b16 %v448
    %v538 = vunpack.c.l.b16 %v449
    %v539 = vunpack.c.h.b16 %v449
    %v540 = vunpack.c.l.b16 %v450
    %v541 = vunpack.c.h.b16 %v450
    %v542 = vunpack.c.l.b16 %v451
    %v543 = vunpack.c.h.b16 %v451
    %v544 = vunpack.c.l.b16 %v452
    %v545 = vunpack.c.h.b16 %v452
    %v546 = vunpack.c.l.b16 %v453
    %v547 = vunpack.c.h.b16 %v453
    %v548 = vunpack.c.l.b16 %v454
    %v549 = vunpack.c.h.b16 %v454
    %v550 = vunpack.c.l.b16 %v455
    %v551 = vunpack.c.h.b16 %v455
    %v552 = vunpack.c.l.b16 %v456
    %v553 = vunpack.c.h.b16 %v456
    %v554 = vunpack.c.l.b16 %v457
    %v555 = vunpack.c.h.b16 %v457
    %v556 = vunpack.c.l.b16 %v458
    %v557 = vunpack.c.h.b16 %v458
    %v558 = vunpack.c.l.b16 %v459
    %v559 = vunpack.c.h.b16 %v459
    %v560 = vunpack.c.l.b16 %v460
    %v561 = vunpack.c.h.b16 %v460
    %v562 = vunpack.c.l.b16 %v461
    %v563 = vunpack.c.h.b16 %v461
    %v564 = vunpack.c.l.b16 %v462
    %v565 = vunpack.c.h.b16 %v462
    %v566 = vunpack.c.l.b16 %v463
    %v567 = vunpack.c.h.b16 %v463
    %v568 = vunpack.c.l.b16 %v464
    %v569 = vunpack.c.h.b16 %v464
    %v570 = vunpack.c.l.b16 %v465
    %v571 = vunpack.c.h.b16 %v465
    %v572 = vunpack.c.l.b16 %v466
    %v573 = vunpack.c.h.b16 %v466
    %v574 = vunpack.c.l.b16 %v467
    %v575 = vunpack.c.h.b16 %v467
    %v576 = vpack.c.b16 %v514, %v512
    %v577 = vpack.c.b16 %v515, %v513
    %v578 = vpack.c.b16 %v518, %v516
    %v579 = vpack.c.b16 %v519, %v517
    %v580 = vpack.c.b16 %v522, %v520
    %v581 = vpack.c.b16 %v523, %v521
    %v582 = vpack.c.b16 %v526, %v524
    %v583 = vpack.c.b16 %v527, %v525
    %v584 = vpack.c.b16 %v530, %v528
    %v585 = vpack.c.b16 %v531, %v529
    %v586 = vpack.c.b16 %v534, %v532
    %v587 = vpack.c.b16 %v535, %v533
    %v588 = vpack.c.b16 %v538, %v536
    %v589 = vpack.c.b16 %v539, %v537
    %v590 = vpack.c.b16 %v542, %v540
    %v591 = vpack.c.b16 %v543, %v541
    %v592 = vpack.c.b16 %v546, %v544
    %v593 = vpack.c.b16 %v547, %v545
    %v594 = vpack.c.b16 %v550, %v548
    %v595 = vpack.c.b16 %v551, %v549
    %v596 = vpack.c.b16 %v554, %v552
    %v597 = vpack.c.b16 %v555, %v553
    %v598 = vpack.c.b16 %v558, %v556
    %v599 = vpack.c.b16 %v559, %v557
    %v600 = vpack.c.b16 %v562, %v560
    %v601 = vpack.c.b16 %v563, %v561
    %v602 = vpack.c.b16 %v566, %v564
    %v603 = vpack.c.b16 %v567, %v565
    %v604 = vpack.c.b16 %v570, %v568
    %v605 = vpack.c.b16 %v571, %v569
    %v606 = vpack.c.b16 %v574, %v572
    %v607 = vpack.c.b16 %v575, %v573
    %640 = vmatprep.subr.bf16.mxu0 %v591
    %641 = vmatpush1.bf16.msra.mxu0 %v590
    %642 = vmatprep.subr.bf16.mxu0 %v589
    %643 = vmatpush1.bf16.msra.mxu0 %v588
    %644 = vmatprep.subr.bf16.mxu0 %v587
    %645 = vmatpush1.bf16.msra.mxu0 %v586
    %646 = vmatprep.subr.bf16.mxu0 %v585
    %647 = vmatpush1.bf16.msra.mxu0 %v584
    %648 = vmatprep.subr.bf16.mxu0 %v583
    %649 = vmatpush1.bf16.msra.mxu0 %v582
    %650 = vmatprep.subr.bf16.mxu0 %v581
    %651 = vmatpush1.bf16.msra.mxu0 %v580
    %652 = vmatprep.subr.bf16.mxu0 %v579
    %653 = vmatpush1.bf16.msra.mxu0 %v578
    %654 = vmatprep.subr.bf16.mxu0 %v577
    %655 = vmatpush1.bf16.msra.mxu0 %v576
    %656 = vmatprep.subr.bf16.mxu0 %v607
    %657 = vmatpush2.bf16.msra.mxu0 %v606
    %658 = vmatprep.subr.bf16.mxu0 %v605
    %659 = vmatpush2.bf16.msra.mxu0 %v604
    %660 = vmatprep.subr.bf16.mxu0 %v603
    %661 = vmatpush2.bf16.msra.mxu0 %v602
    %662 = vmatprep.subr.bf16.mxu0 %v601
    %663 = vmatpush2.bf16.msra.mxu0 %v600
    %664 = vmatprep.subr.bf16.mxu0 %v599
    %665 = vmatpush2.bf16.msra.mxu0 %v598
    %666 = vmatprep.subr.bf16.mxu0 %v597
    %667 = vmatpush2.bf16.msra.mxu0 %v596
    %668 = vmatprep.subr.bf16.mxu0 %v595
    %669 = vmatpush2.bf16.msra.mxu0 %v594
    %670 = vmatprep.subr.bf16.mxu0 %v593
    %671 = vmatpush2.bf16.msra.mxu0 %v592
    %672 = vmatprep.mubr.bf16.mxu0 %v435
    %673 = vmatmul.mubr.bf16.gmra.mxu0 %v434
    %v674 = vpop.f32.mrf.mxu0
    %v675 = vadd.f32 %v473, %v674
    %v676 = vpop.f32.mrf.mxu0
    %v677 = vadd.f32 %v477, %v676
    %v678 = vpop.f32.mrf.mxu0
    %v679 = vpop.f32.mrf.mxu0
    %680 = vdwg.mxu0
    %v681 = vmax.f32 %v675, 0.0
    %v682 = vmax.f32 %v677, 0.0
    %v683 = vpack.c.bf16 %v681, %v681
    %v684 = vpack.c.bf16 %v682, %v682
    %v685 = vld [vmem:[#allocation8] sm:$0xff]
    %v686 = vld [vmem:[#allocation8 + $0x8] sm:$0xff]
    %v687 = vld [vmem:[#allocation8 + $0x10] sm:$0xff]
    %v688 = vld [vmem:[#allocation8 + $0x18] sm:$0xff]
    %v689 = vld [vmem:[#allocation8 + $0x20] sm:$0xff]
    %v690 = vld [vmem:[#allocation8 + $0x28] sm:$0xff]
    %v691 = vld [vmem:[#allocation8 + $0x30] sm:$0xff]
    %v692 = vld [vmem:[#allocation8 + $0x38] sm:$0xff]
    %v693 = vld [vmem:[#allocation8 + $0x40] sm:$0xff]
    %v694 = vld [vmem:[#allocation8 + $0x48] sm:$0xff]
    %v695 = vld [vmem:[#allocation8 + $0x50] sm:$0xff]
    %v696 = vld [vmem:[#allocation8 + $0x58] sm:$0xff]
    %v697 = vld [vmem:[#allocation8 + $0x60] sm:$0xff]
    %v698 = vld [vmem:[#allocation8 + $0x68] sm:$0xff]
    %v699 = vld [vmem:[#allocation8 + $0x70] sm:$0xff]
    %v700 = vld [vmem:[#allocation8 + $0x78] sm:$0xff]
    %v701 = vld [vmem:[#allocation8 + $0x80] sm:$0xff]
    %v702 = vld [vmem:[#allocation8 + $0x88] sm:$0xff]
    %v703 = vld [vmem:[#allocation8 + $0x90] sm:$0xff]
    %v704 = vld [vmem:[#allocation8 + $0x98] sm:$0xff]
    %v705 = vld [vmem:[#allocation8 + $0xa0] sm:$0xff]
    %v706 = vld [vmem:[#allocation8 + $0xa8] sm:$0xff]
    %v707 = vld [vmem:[#allocation8 + $0xb0] sm:$0xff]
    %v708 = vld [vmem:[#allocation8 + $0xb8] sm:$0xff]
    %v709 = vld [vmem:[#allocation8 + $0xc0] sm:$0xff]
    %v710 = vld [vmem:[#allocation8 + $0xc8] sm:$0xff]
    %v711 = vld [vmem:[#allocation8 + $0xd0] sm:$0xff]
    %v712 = vld [vmem:[#allocation8 + $0xd8] sm:$0xff]
    %v713 = vld [vmem:[#allocation8 + $0xe0] sm:$0xff]
    %v714 = vld [vmem:[#allocation8 + $0xe8] sm:$0xff]
    %v715 = vld [vmem:[#allocation8 + $0xf0] sm:$0xff]
    %v716 = vld [vmem:[#allocation8 + $0xf8] sm:$0xff]
    %v717 = vld [vmem:[%s9] sm:$0x3]
    %v719 = vlaneseq
    %v720 = vshrl.u32 %v719, 7
    %v721 = vsub.s32 0, %v720
    %v722 = vrot.slane %v717, %v721
    %v723 = vlaneseq
    %v724 = vshrl.u32 %v723, 7
    %v725 = vsub.s32 1, %v724
    %v726 = vrot.slane %v717, %v725
    %v761 = vunpack.c.l.b16 %v685
    %v762 = vunpack.c.h.b16 %v685
    %v763 = vunpack.c.l.b16 %v686
    %v764 = vunpack.c.h.b16 %v686
    %v765 = vunpack.c.l.b16 %v687
    %v766 = vunpack.c.h.b16 %v687
    %v767 = vunpack.c.l.b16 %v688
    %v768 = vunpack.c.h.b16 %v688
    %v769 = vunpack.c.l.b16 %v689
    %v770 = vunpack.c.h.b16 %v689
    %v771 = vunpack.c.l.b16 %v690
    %v772 = vunpack.c.h.b16 %v690
    %v773 = vunpack.c.l.b16 %v691
    %v774 = vunpack.c.h.b16 %v691
    %v775 = vunpack.c.l.b16 %v692
    %v776 = vunpack.c.h.b16 %v692
    %v777 = vunpack.c.l.b16 %v693
    %v778 = vunpack.c.h.b16 %v693
    %v779 = vunpack.c.l.b16 %v694
    %v780 = vunpack.c.h.b16 %v694
    %v781 = vunpack.c.l.b16 %v695
    %v782 = vunpack.c.h.b16 %v695
    %v783 = vunpack.c.l.b16 %v696
    %v784 = vunpack.c.h.b16 %v696
    %v785 = vunpack.c.l.b16 %v697
    %v786 = vunpack.c.h.b16 %v697
    %v787 = vunpack.c.l.b16 %v698
    %v788 = vunpack.c.h.b16 %v698
    %v789 = vunpack.c.l.b16 %v699
    %v790 = vunpack.c.h.b16 %v699
    %v791 = vunpack.c.l.b16 %v700
    %v792 = vunpack.c.h.b16 %v700
    %v793 = vunpack.c.l.b16 %v701
    %v794 = vunpack.c.h.b16 %v701
    %v795 = vunpack.c.l.b16 %v702
    %v796 = vunpack.c.h.b16 %v702
    %v797 = vunpack.c.l.b16 %v703
    %v798 = vunpack.c.h.b16 %v703
    %v799 = vunpack.c.l.b16 %v704
    %v800 = vunpack.c.h.b16 %v704
    %v801 = vunpack.c.l.b16 %v705
    %v802 = vunpack.c.h.b16 %v705
    %v803 = vunpack.c.l.b16 %v706
    %v804 = vunpack.c.h.b16 %v706
    %v805 = vunpack.c.l.b16 %v707
    %v806 = vunpack.c.h.b16 %v707
    %v807 = vunpack.c.l.b16 %v708
    %v808 = vunpack.c.h.b16 %v708
    %v809 = vunpack.c.l.b16 %v709
    %v810 = vunpack.c.h.b16 %v709
    %v811 = vunpack.c.l.b16 %v710
    %v812 = vunpack.c.h.b16 %v710
    %v813 = vunpack.c.l.b16 %v711
    %v814 = vunpack.c.h.b16 %v711
    %v815 = vunpack.c.l.b16 %v712
    %v816 = vunpack.c.h.b16 %v712
    %v817 = vunpack.c.l.b16 %v713
    %v818 = vunpack.c.h.b16 %v713
    %v819 = vunpack.c.l.b16 %v714
    %v820 = vunpack.c.h.b16 %v714
    %v821 = vunpack.c.l.b16 %v715
    %v822 = vunpack.c.h.b16 %v715
    %v823 = vunpack.c.l.b16 %v716
    %v824 = vunpack.c.h.b16 %v716
    %v825 = vpack.c.b16 %v763, %v761
    %v826 = vpack.c.b16 %v764, %v762
    %v827 = vpack.c.b16 %v767, %v765
    %v828 = vpack.c.b16 %v768, %v766
    %v829 = vpack.c.b16 %v771, %v769
    %v830 = vpack.c.b16 %v772, %v770
    %v831 = vpack.c.b16 %v775, %v773
    %v832 = vpack.c.b16 %v776, %v774
    %v833 = vpack.c.b16 %v779, %v777
    %v834 = vpack.c.b16 %v780, %v778
    %v835 = vpack.c.b16 %v783, %v781
    %v836 = vpack.c.b16 %v784, %v782
    %v837 = vpack.c.b16 %v787, %v785
    %v838 = vpack.c.b16 %v788, %v786
    %v839 = vpack.c.b16 %v791, %v789
    %v840 = vpack.c.b16 %v792, %v790
    %v841 = vpack.c.b16 %v795, %v793
    %v842 = vpack.c.b16 %v796, %v794
    %v843 = vpack.c.b16 %v799, %v797
    %v844 = vpack.c.b16 %v800, %v798
    %v845 = vpack.c.b16 %v803, %v801
    %v846 = vpack.c.b16 %v804, %v802
    %v847 = vpack.c.b16 %v807, %v805
    %v848 = vpack.c.b16 %v808, %v806
    %v849 = vpack.c.b16 %v811, %v809
    %v850 = vpack.c.b16 %v812, %v810
    %v851 = vpack.c.b16 %v815, %v813
    %v852 = vpack.c.b16 %v816, %v814
    %v853 = vpack.c.b16 %v819, %v817
    %v854 = vpack.c.b16 %v820, %v818
    %v855 = vpack.c.b16 %v823, %v821
    %v856 = vpack.c.b16 %v824, %v822
    %889 = vmatprep.subr.bf16.mxu0 %v840
    %890 = vmatpush1.bf16.msra.mxu0 %v839
    %891 = vmatprep.subr.bf16.mxu0 %v838
    %892 = vmatpush1.bf16.msra.mxu0 %v837
    %893 = vmatprep.subr.bf16.mxu0 %v836
    %894 = vmatpush1.bf16.msra.mxu0 %v835
    %895 = vmatprep.subr.bf16.mxu0 %v834
    %896 = vmatpush1.bf16.msra.mxu0 %v833
    %897 = vmatprep.subr.bf16.mxu0 %v832
    %898 = vmatpush1.bf16.msra.mxu0 %v831
    %899 = vmatprep.subr.bf16.mxu0 %v830
    %900 = vmatpush1.bf16.msra.mxu0 %v829
    %901 = vmatprep.subr.bf16.mxu0 %v828
    %902 = vmatpush1.bf16.msra.mxu0 %v827
    %903 = vmatprep.subr.bf16.mxu0 %v826
    %904 = vmatpush1.bf16.msra.mxu0 %v825
    %905 = vmatprep.subr.bf16.mxu0 %v856
    %906 = vmatpush2.bf16.msra.mxu0 %v855
    %907 = vmatprep.subr.bf16.mxu0 %v854
    %908 = vmatpush2.bf16.msra.mxu0 %v853
    %909 = vmatprep.subr.bf16.mxu0 %v852
    %910 = vmatpush2.bf16.msra.mxu0 %v851
    %911 = vmatprep.subr.bf16.mxu0 %v850
    %912 = vmatpush2.bf16.msra.mxu0 %v849
    %913 = vmatprep.subr.bf16.mxu0 %v848
    %914 = vmatpush2.bf16.msra.mxu0 %v847
    %915 = vmatprep.subr.bf16.mxu0 %v846
    %916 = vmatpush2.bf16.msra.mxu0 %v845
    %917 = vmatprep.subr.bf16.mxu0 %v844
    %918 = vmatpush2.bf16.msra.mxu0 %v843
    %919 = vmatprep.subr.bf16.mxu0 %v842
    %920 = vmatpush2.bf16.msra.mxu0 %v841
    %921 = vmatprep.mubr.bf16.mxu0 %v684
    %922 = vmatmul.mubr.bf16.gmra.mxu0 %v683
    %v923 = vpop.f32.mrf.mxu0
    %v924 = vadd.f32 %v722, %v923
    %v925 = vpop.f32.mrf.mxu0
    %v926 = vadd.f32 %v726, %v925
    %v927 = vpop.f32.mrf.mxu0
    %v928 = vpop.f32.mrf.mxu0
    %929 = vdwg.mxu0
    %v930 = vmax.f32 %v926, -20.0
    %v931 = vmin.f32 %v930, 2.0
    %v932 = vmul.f32 %v931, 1.442695
    %v933 = vpow.pop %v932
    %v934 = vld [vmem:[%s1] sm:$0xff]
    %v935 = vmul.f32 %v933, %v934
    %v936 = vadd.f32 %v924, %v935
    %v937 = vmul.f32 %v934, %v934
    %v938 = vmul.f32 %v937, -0.5
    %v939 = vsub.f32 %v938, %v931
    %v940 = vsub.f32 %v939, 0.9189385
    %v941 = vsub.f32 0.6931472, %v936
    %v942 = vmul.f32 %v936, -2.0
    %v943 = vmax.f32 %v942, 0.0
    %vm944 = vcmp.ne.f32.partialorder %v942, %v942
    %v945 = vadd.f32 %v942, 0.0
    %v946 = vand.u32 2147483647, %v942
    %v947 = vsub.f32 0.0, %v946
    %v948 = vmul.f32 %v947, 1.442695
    %v949 = vpow.pop %v948
    %v950 = vadd.f32 %v949, 1.0
    %v951 = vlog2.pop %v950
    %v952 = vmul.f32 %v951, 0.6931472
    %v953 = vmul.f32 -0.5, %v949
    %v954 = vadd.f32 %v953, 1.0
    %v955 = vmul.f32 %v954, %v949
    %v956 = vand.u32 2147483647, %v949
    %vm957 = vcmp.lt.f32.partialorder %v956, 0.0004427343
    %v958 = vsel %vm957, %v955, %v952
    %v959 = vadd.f32 %v943, %v958
    %v960 = vsel %vm944, %v945, %v959
    %v961 = vsub.f32 %v941, %v960
    %v962 = vmul.f32 %v961, 2.0
    %v963 = vsub.f32 %v940, %v962
    %vm964 = vcmask 31744
    %v965 = vsel %vm964, %v963, 0.0
    %966 = vadd.xlane.f32.xlu0 %v965
    %v967 = vpop.xlane.xlu0 %966
    %v968 = vtanh.pop %v936
    %969 = vst [vmem:[#allocation10] sm:$0xff] 0.0
    %970 = vst.msk [vmem:[#allocation10] sm:$0xff] %vm964, %v968
    %vm971 = vcmask 39968
    %972 = vst.msk [vmem:[#allocation10] sm:$0xff] %vm971, %v967
    // Predicated region
    $region58: #{tpu_custom_call.1} parent=1 // pred_check
      _
    $region59: #{tpu_custom_call.1} parent=1 // pred_check_branch
      %974 = sbr.rel (0) target = $region61
    $region60: #{tpu_custom_call.1} parent=1 // pred_region
      %s976 = ssub.s32 128, 128
      %977 = vsyncadd [#allocation4], %s976
      %s979 = sshll.u32 [#allocation10], 4
      %s980 = int_to_ptr.vmem [resolvable:$true] %s979
      %982 = dma.vmem_to_hbm [thread:$0]  %s980, 128, %s10, [#allocation4]
    $region61: #{tpu_custom_call.1} parent=1 // pred_fallthru
      _
    // Predicated region
    $region62: #{tpu_custom_call.1} parent=1 // pred_check
      _
    $region63: #{tpu_custom_call.1} parent=1 // pred_check_branch
      %984 = sbr.rel (0) target = $region65
    $region64: #{tpu_custom_call.1} parent=1 // pred_region
      %985 = dma.done [#allocation4], 128
    $region65: #{tpu_custom_call.1} parent=1 // pred_fallthru
      _
    %986 = vsyncpa [#allocation3], 1
    %987 = vsyncpa [#allocation6], 1
    %988 = vsyncpa [#allocation9], 1
    %989 = vsyncpa [#allocation4], 1

</llo_original>
